<compile_context>
chip_gen: v7x
topology: tpu7x:2x2x1
jax: 0.10.0
libtpu: 0.0.40
codegen_flags: <defaults>
</compile_context>

<pallas_src>
import jax
import jax.numpy as jnp
from jax.experimental import pallas as pl
from jax.experimental.pallas import tpu as pltpu

EPS = 1e-5
SLAB_BUDGET_BYTES = 24 * 1024 * 1024   # double-buffered in+out slabs + f32 temps
VMEM_LIMIT_BYTES = 48 * 1024 * 1024    # < 64 MiB (v7x physical), >> 16/32 MiB defaults


def _bn_kernel(x_ref, w_ref, b_ref, o_ref):
    n, tc = x_ref.shape
    off = pl.multiple_of(pl.program_id(0) * tc, 128)   # 128-aligned lane offset
    inv_n = jnp.float32(1.0 / n)

    xf = x_ref[...].astype(jnp.float32)                        # (N, TC) f32
    mean = jnp.sum(xf, axis=0, keepdims=True) * inv_n          # (1, TC)
    xc = xf - mean                                             # reused for var & output
    var = jnp.sum(xc * xc, axis=0, keepdims=True) * inv_n      # biased variance
    inv_std = jax.lax.rsqrt(var + jnp.float32(EPS))            # EUP, cheap

    w = w_ref[:, pl.ds(off, tc)]                               # resident, sliced in VMEM
    b = b_ref[:, pl.ds(off, tc)]
    scale = inv_std * w                                        # (1, TC)
    o_ref[...] = (xc * scale + b).astype(o_ref.dtype)


def _pick_feature_tile(n, c_pad, dtype_bytes):
    """Pick lane tile TC (multiple of 128 dividing c_pad) and the grid step count."""

    def working_bytes(tc):
        io = 2 * 2 * n * tc * dtype_bytes   # 2-deep pipeline x (input + output) slabs
        f32 = 2 * n * tc * 4                # xf + xc f32 intermediates in the kernel
        return io + f32

    if working_bytes(128) > SLAB_BUDGET_BYTES:
        # TODO(synk): N-streamed two-pass accumulator variant (grid over batch,
        # per-feature sum/sumsq scratch, pl.when init/finalize) for huge batches.
        raise ValueError(
            f"batch size {n} needs more VMEM than budgeted for a single "
            f"(N, 128) feature slab; N-streaming is not implemented")

    tc = 128
    for cand in (4096, 2048, 1024, 512, 256):
        if c_pad % cand == 0 and working_bytes(cand) <= SLAB_BUDGET_BYTES:
            tc = cand
            break

    steps = c_pad // tc
    # v7x megacore: want >= 2 grid steps, and an even step count when it is cheap.
    while tc > 128 and (steps < 2 or (steps % 2 == 1 and steps < 8)):
        half = tc // 2
        if half % 128 != 0 or c_pad % half != 0:
            break
        tc, steps = half, c_pad // half
    return tc, steps


def batchnorm_v1_forward(x, weight, bias):
    """x: (N, dim_z); weight, bias: (dim_z,). Returns BatchNorm1d(x) (training mode)."""
    n, c = x.shape
    c_pad = ((c + 127) // 128) * 128
    dtype_bytes = jnp.dtype(x.dtype).itemsize
    tc, steps = _pick_feature_tile(n, c_pad, dtype_bytes)

    w2 = weight.astype(jnp.float32).reshape(1, c)
    b2 = bias.astype(jnp.float32).reshape(1, c)
    if c_pad != c:
        pad = c_pad - c
        x = jnp.pad(x, ((0, 0), (0, pad)))
        w2 = jnp.pad(w2, ((0, 0), (0, pad)), constant_values=1.0)
        b2 = jnp.pad(b2, ((0, 0), (0, pad)))

    # Deeper pipelining only pays when slabs are tiny and there are enough steps.
    x_spec_kwargs = {}
    if steps >= 3 and n * tc * dtype_bytes < 512 * 1024:
        x_spec_kwargs["pipeline_mode"] = pl.Buffered(3)

    out = pl.pallas_call(
        _bn_kernel,
        out_shape=jax.ShapeDtypeStruct((n, c_pad), x.dtype),
        grid=(steps,),
        in_specs=[
            pl.BlockSpec((n, tc), lambda j: (0, j), **x_spec_kwargs),
            pl.BlockSpec((1, c_pad), lambda j: (0, 0)),   # weight: resident across grid
            pl.BlockSpec((1, c_pad), lambda j: (0, 0)),   # bias:   resident across grid
        ],
        out_specs=pl.BlockSpec((n, tc), lambda j: (0, j)),
        compiler_params=pltpu.CompilerParams(
            dimension_semantics=("parallel",),   # feature slabs are independent
            vmem_limit_bytes=VMEM_LIMIT_BYTES,
        ),
    )(x, w2, b2)

    return out if c_pad == c else out[:, :c]


def batchnorm_v1_reference(x, weight, bias):
    x = x.astype(jnp.float32)
    mean = jnp.mean(x, axis=0, keepdims=True)
    var = jnp.mean((x - mean) ** 2, axis=0, keepdims=True)
    return ((x - mean) / jnp.sqrt(var + EPS) * weight[None, :].astype(jnp.float32)
            + bias[None, :].astype(jnp.float32))


if __name__ == "__main__":
    key = jax.random.PRNGKey(0)
    k0, k1, k2 = jax.random.split(key, 3)
    tau = 0.5

    # --- module's shipped config: dim_z=32 (padded to 128 lanes), batch=8 ----
    dim_z, batch = 32, 8
    x = jax.random.normal(k0, (batch, dim_z), dtype=jnp.float32)
    w = jnp.ones((dim_z,), jnp.float32)          # nn.BatchNorm1d default weight
    b = jnp.full((dim_z,), tau, jnp.float32)     # bias.fill_(tau), frozen
    out = jax.block_until_ready(batchnorm_v1_forward(x, w, b))
    ref = batchnorm_v1_reference(x, w, b)
    assert out.shape == (batch, dim_z)
    assert jnp.allclose(out, ref, atol=1e-5, rtol=1e-5), "mismatch (dim_z=32)"

    # --- multi-step 'parallel' grid (c=512 -> tc=256, 2 even steps) ----------
    n2, c2 = 16, 512
    x2 = jax.random.normal(k1, (n2, c2), dtype=jnp.float32) * 3.0 + 1.5
    w2 = jax.random.normal(k2, (c2,), dtype=jnp.float32) * 0.1 + 1.0
    b2 = jnp.full((c2,), tau, jnp.float32)
    out2 = jax.block_until_ready(batchnorm_v1_forward(x2, w2, b2))
    ref2 = batchnorm_v1_reference(x2, w2, b2)
    assert jnp.allclose(out2, ref2, atol=1e-4, rtol=1e-4), "mismatch (tiled)"

    # --- bf16 input + non-128-multiple feature dim (wrapper padding path) ----
    n3, c3 = 16, 200
    x3 = (jax.random.normal(k1, (n3, c3), dtype=jnp.float32) * 2.0 - 0.7
          ).astype(jnp.bfloat16)
    w3 = jnp.ones((c3,), jnp.float32)
    b3 = jnp.full((c3,), tau, jnp.float32)
    out3 = jax.block_until_ready(batchnorm_v1_forward(x3, w3, b3))
    ref3 = batchnorm_v1_reference(x3, w3, b3)
    assert out3.dtype == jnp.bfloat16 and out3.shape == (n3, c3)
    assert jnp.allclose(out3.astype(jnp.float32), ref3, atol=5e-2, rtol=5e-2), \
        "mismatch (bf16 / padded features)"

    print("KERNEL_OK")
</pallas_src>

<mosaic_0001>
module attributes {stable_mosaic.version = 11 : i64} {
  func.func @_bn_kernel(%arg0: i32, %arg1: memref<8x128xf32, #tpu.memory_space<vmem>>, %arg2: memref<1x128xf32, #tpu.memory_space<vmem>>, %arg3: memref<1x128xf32, #tpu.memory_space<vmem>>, %arg4: memref<8x128xf32, #tpu.memory_space<vmem>>) attributes {dimension_semantics = [#tpu.dimension_semantics<parallel>], iteration_bounds = array<i64: 1>, scalar_prefetch = 0 : i64, scratch_operands = 0 : i64, tpu.core_type = #tpu.core_type<tc>, window_params = [{transform_indices = @transform_0, window_bounds = array<i64: 8, 128>}, {pipeline_mode = #tpu.pipeline_mode<synchronous>, transform_indices = @transform_1, window_bounds = array<i64: 1, 128>}, {pipeline_mode = #tpu.pipeline_mode<synchronous>, transform_indices = @transform_2, window_bounds = array<i64: 1, 128>}, {transform_indices = @transform_3, window_bounds = array<i64: 8, 128>}]} {
    %c128_i32 = arith.constant 128 : i32
    %0 = arith.muli %arg0, %c128_i32 : i32
    %1 = tpu.assume_multiple %0, 128 : i32
    %c0 = arith.constant 0 : index
    %c0_0 = arith.constant 0 : index
    %2 = vector.load %arg1[%c0, %c0_0] : memref<8x128xf32, #tpu.memory_space<vmem>>, vector<8x128xf32>
    %cst = arith.constant dense<0.000000e+00> : vector<128xf32>
    %3 = vector.multi_reduction <add>, %2, %cst [0] : vector<8x128xf32> to vector<128xf32>
    %4 = vector.shape_cast %3 : vector<128xf32> to vector<1x128xf32>
    %cst_1 = arith.constant 1.250000e-01 : f32
    %5 = vector.broadcast %cst_1 : f32 to vector<1x128xf32>
    %6 = arith.mulf %4, %5 : vector<1x128xf32>
    %7 = vector.broadcast %6 : vector<1x128xf32> to vector<8x128xf32>
    %8 = arith.subf %2, %7 : vector<8x128xf32>
    %9 = arith.mulf %8, %8 : vector<8x128xf32>
    %cst_2 = arith.constant dense<0.000000e+00> : vector<128xf32>
    %10 = vector.multi_reduction <add>, %9, %cst_2 [0] : vector<8x128xf32> to vector<128xf32>
    %11 = vector.shape_cast %10 : vector<128xf32> to vector<1x128xf32>
    %cst_3 = arith.constant 1.250000e-01 : f32
    %12 = vector.broadcast %cst_3 : f32 to vector<1x128xf32>
    %13 = arith.mulf %11, %12 : vector<1x128xf32>
    %cst_4 = arith.constant 9.99999974E-6 : f32
    %14 = vector.broadcast %cst_4 : f32 to vector<1x128xf32>
    %15 = arith.addf %13, %14 : vector<1x128xf32>
    %16 = math.rsqrt %15 : vector<1x128xf32>
    %c0_5 = arith.constant 0 : index
    %17 = arith.index_cast %1 : i32 to index
    %18 = vector.load %arg2[%c0_5, %17] : memref<1x128xf32, #tpu.memory_space<vmem>>, vector<1x128xf32>
    %c0_6 = arith.constant 0 : index
    %19 = arith.index_cast %1 : i32 to index
    %20 = vector.load %arg3[%c0_6, %19] : memref<1x128xf32, #tpu.memory_space<vmem>>, vector<1x128xf32>
    %21 = arith.mulf %16, %18 : vector<1x128xf32>
    %22 = vector.broadcast %21 : vector<1x128xf32> to vector<8x128xf32>
    %23 = arith.mulf %8, %22 : vector<8x128xf32>
    %24 = vector.broadcast %20 : vector<1x128xf32> to vector<8x128xf32>
    %25 = arith.addf %23, %24 : vector<8x128xf32>
    %c0_7 = arith.constant 0 : index
    %c0_8 = arith.constant 0 : index
    %26 = vector.load %arg4[%c0_7, %c0_8] : memref<8x128xf32, #tpu.memory_space<vmem>>, vector<8x128xf32>
    tpu.vector_store %arg4[%c0_7, %c0_8], %25 {strides = array<i32>} : memref<8x128xf32, #tpu.memory_space<vmem>>, vector<8x128xf32>,
    return
  }
  func.func @transform_0(%arg0: i32) -> (i32, i32) {
    %c0_i32 = arith.constant 0 : i32
    %c0_i32_0 = arith.constant 0 : i32
    return %c0_i32, %arg0 : i32, i32
  }
  func.func @transform_1(%arg0: i32) -> (i32, i32) {
    %c0_i32 = arith.constant 0 : i32
    %c0_i32_0 = arith.constant 0 : i32
    %c0_i32_1 = arith.constant 0 : i32
    return %c0_i32, %c0_i32_0 : i32, i32
  }
  func.func @transform_2(%arg0: i32) -> (i32, i32) {
    %c0_i32 = arith.constant 0 : i32
    %c0_i32_0 = arith.constant 0 : i32
    %c0_i32_1 = arith.constant 0 : i32
    return %c0_i32, %c0_i32_0 : i32, i32
  }
  func.func @transform_3(%arg0: i32) -> (i32, i32) {
    %c0_i32 = arith.constant 0 : i32
    %c0_i32_0 = arith.constant 0 : i32
    return %c0_i32, %arg0 : i32, i32
  }
}

</mosaic_0001>

<llo_original>
// kernel: tpu_custom_call.1
$region0: #{tpu_custom_call.1}
  #allocation0 [shape = 'u32[]', space=smem, size = 0x4, offset = 0x4, fixed_abs, tag = 'smem constant byte address 0x4 - core index']
  #allocation1 [shape = 'u32[144,128]{1,0:T(1,128)}', space=vmem, size = 0x12000, scoped, tag = 'internal scratch']
  %s0 = inlined_call_operand.hbm [shape: f32[8,128], index: 0, kind: input, shape index: {}]
  %s1 = inlined_call_operand.vmem [shape: f32[1,128], index: 1, kind: input, shape index: {}]
  %s2 = inlined_call_operand.vmem [shape: f32[1,128], index: 2, kind: input, shape index: {}]
  %s3 = inlined_call_operand.hbm [shape: f32[8,128], index: 3, kind: output, shape index: {}]
  %s4 = sld [smem:[#allocation0]]
  $region26: #{tpu_custom_call.1} parent=0
    _
  %s6 = ssub.s32 1, %s4
  %s7 = scalar_select 0, %s6, %s4
  $region1: #{tpu_custom_call.1} parent=0
    #allocation2 [shape = 'u8[4096]{0}', space=vmem, size = 0x1000, scoped, tag = 'input window, operand 0, single buffered']
    #allocation3 [shape = 's32[1]{0}', space=sflag, size = 0x4, scoped, tag = 'scoped memory for tpu_custom_call.1']
    #allocation4 [shape = 's32[1]{0}', space=sflag, size = 0x4, scoped, tag = 'scoped memory for tpu_custom_call.1']
    #allocation5 [shape = 'u8[4096]{0}', space=vmem, size = 0x1000, scoped, tag = 'output window, operand 0, single buffered']
    %8 = vsyncpa [#allocation3], 0
    %9 = vsyncpa [#allocation4], 0
    // Predicated region
    $region2: #{tpu_custom_call.1} parent=1 // pred_check
      _
    $region3: #{tpu_custom_call.1} parent=1 // pred_check_branch
      %11 = sbr.rel (0) target = $region5
    $region4: #{tpu_custom_call.1} parent=1 // pred_region
      %s13 = ssub.s32 128, 128
      %14 = vsyncadd [#allocation3], %s13
      %s16 = sshll.u32 [#allocation2], 4
      %s17 = int_to_ptr.vmem [resolvable:$true] %s16
      %19 = dma.hbm_to_vmem [thread:$0]  %s0, 128, %s17, [#allocation3]
    $region5: #{tpu_custom_call.1} parent=1 // pred_fallthru
      _
    // Predicated region
    $region6: #{tpu_custom_call.1} parent=1 // pred_check
      _
    $region7: #{tpu_custom_call.1} parent=1 // pred_check_branch
      %21 = sbr.rel (0) target = $region9
    $region8: #{tpu_custom_call.1} parent=1 // pred_region
      _
    $region9: #{tpu_custom_call.1} parent=1 // pred_fallthru
      _
    // Predicated region
    $region10: #{tpu_custom_call.1} parent=1 // pred_check
      _
    $region11: #{tpu_custom_call.1} parent=1 // pred_check_branch
      %23 = sbr.rel (0) target = $region13
    $region12: #{tpu_custom_call.1} parent=1 // pred_region
      _
    $region13: #{tpu_custom_call.1} parent=1 // pred_fallthru
      _
    // Predicated region
    $region14: #{tpu_custom_call.1} parent=1 // pred_check
      _
    $region15: #{tpu_custom_call.1} parent=1 // pred_check_branch
      %25 = sbr.rel (0) target = $region17
    $region16: #{tpu_custom_call.1} parent=1 // pred_region
      %26 = dma.done [#allocation3], 128
    $region17: #{tpu_custom_call.1} parent=1 // pred_fallthru
      _
    %s27 = smul.u32 0, 128
    %v28 = vld [vmem:[#allocation2] sm:$0xff]
    %v29 = vrot.slane %v28, 4
    %v30 = vadd.f32 %v28, %v29
    %v31 = vrot.slane %v30, 2
    %v32 = vadd.f32 %v30, %v31
    %v33 = vrot.slane %v32, 1
    %v34 = vadd.f32 %v32, %v33
    %v35 = vmul.f32 %v34, 0.125
    %v36 = vsub.f32 %v28, %v35
    %v37 = vmul.f32 %v36, %v36
    %v38 = vrot.slane %v37, 4
    %v39 = vadd.f32 %v37, %v38
    %v40 = vrot.slane %v39, 2
    %v41 = vadd.f32 %v39, %v40
    %v42 = vrot.slane %v41, 1
    %v43 = vadd.f32 %v41, %v42
    %v44 = vmul.f32 %v43, 0.125
    %v45 = vadd.f32 %v44, 1e-05
    %v46 = vrsqrt.pop %v45
    %s47 = sshra.s32 %s27, 7
    %s48 = sand.u32 %s27, 127
    %s49 = scalar_lea.vmem %s1, %s47
    %v50 = vld [vmem:[%s49] sm:$0x1]
    %s51 = scalar_lea.vmem %s2, %s47
    %v52 = vld [vmem:[%s51] sm:$0x1]
    %v53 = vmul.f32 %v46, %v50
    %v54 = vlaneseq
    %v55 = vshrl.u32 %v54, 7
    %v56 = vsub.s32 0, %v55
    %v57 = vrot.slane %v53, %v56
    %v58 = vmul.f32 %v36, %v57
    %v60 = vlaneseq
    %v61 = vshrl.u32 %v60, 7
    %v62 = vsub.s32 0, %v61
    %v63 = vrot.slane %v52, %v62
    %v65 = vadd.f32 %v58, %v63
    %66 = vst [vmem:[#allocation5] sm:$0xff] %v65
    // Predicated region
    $region18: #{tpu_custom_call.1} parent=1 // pred_check
      _
    $region19: #{tpu_custom_call.1} parent=1 // pred_check_branch
      %68 = sbr.rel (0) target = $region21
    $region20: #{tpu_custom_call.1} parent=1 // pred_region
      %s70 = ssub.s32 128, 128
      %71 = vsyncadd [#allocation4], %s70
      %s73 = sshll.u32 [#allocation5], 4
      %s74 = int_to_ptr.vmem [resolvable:$true] %s73
      %76 = dma.vmem_to_hbm [thread:$0]  %s74, 128, %s3, [#allocation4]
    $region21: #{tpu_custom_call.1} parent=1 // pred_fallthru
      _
    // Predicated region
    $region22: #{tpu_custom_call.1} parent=1 // pred_check
      _
    $region23: #{tpu_custom_call.1} parent=1 // pred_check_branch
      %78 = sbr.rel (0) target = $region25
    $region24: #{tpu_custom_call.1} parent=1 // pred_region
      %79 = dma.done [#allocation4], 128
    $region25: #{tpu_custom_call.1} parent=1 // pred_fallthru
      _
    %80 = vsyncpa [#allocation3], 1
    %81 = vsyncpa [#allocation4], 1

</llo_original>
